<compile_context>
chip_gen: v6e
topology: v6e:2x2x1
jax: 0.10.0
libtpu: 0.0.40
codegen_flags: <defaults>
</compile_context>

<pallas_src>
import jax
import jax.numpy as jnp
from jax import lax
from jax.experimental import pallas as pl
from jax.experimental.pallas import tpu as pltpu


def _mlp_kernel(x_ref, w1_ref, b1_ref, w2_ref, b2_ref, o_ref):
    # x_ref : (TR, 128) VMEM, interleaved [x0, x1, x0, x1, ...] along lanes
    # w1_ref: (2, 3) SMEM   b1_ref: (3,) SMEM
    # w2_ref: (3, 2) SMEM   b2_ref: (2,) SMEM
    # o_ref : (TR, 128) VMEM, interleaved [o0, o1, o0, o1, ...] along lanes
    x = x_ref[...]

    lane = lax.broadcasted_iota(jnp.int32, x.shape, 1)
    even = (lane & 1) == 0                       # even lane -> x0 / logit0 slot

    # Deinterleave via XLU lane rotations (each pair sits inside one row, so
    # the wrap-around lanes are always masked out by the parity select).
    x_prev = pltpu.roll(x, 1, axis=1)            # lane j <- lane j-1
    x_next = pltpu.roll(x, 127, axis=1)          # lane j <- lane j+1
    x0 = jnp.where(even, x, x_prev)              # x0 of the pair, on every lane
    x1 = jnp.where(even, x_next, x)              # x1 of the pair, on every lane

    # Hidden layer (3 units): scalar-broadcast FMAs on the VPU, tanh on EUP.
    h0 = jnp.tanh(w1_ref[0, 0] * x0 + w1_ref[1, 0] * x1 + b1_ref[0])
    h1 = jnp.tanh(w1_ref[0, 1] * x0 + w1_ref[1, 1] * x1 + b1_ref[1])
    h2 = jnp.tanh(w1_ref[0, 2] * x0 + w1_ref[1, 2] * x1 + b1_ref[2])

    # Output layer: lane-parity-selected weights so even lanes emit logit 0
    # and odd lanes emit logit 1 -> output stays interleaved like the input.
    wa = jnp.where(even, w2_ref[0, 0], w2_ref[0, 1])
    wb = jnp.where(even, w2_ref[1, 0], w2_ref[1, 1])
    wc = jnp.where(even, w2_ref[2, 0], w2_ref[2, 1])
    bo = jnp.where(even, b2_ref[0], b2_ref[1])

    o_ref[...] = (wa * h0 + wb * h1 + wc * h2 + bo).astype(o_ref.dtype)


def _round_up(a, m):
    return ((a + m - 1) // m) * m


def net_forward(x, w1, b1, w2, b2, *, tb_rows=2048):
    """x: (B, 2) f32 -> (B, 2) f32, equivalent to Net.forward.

    Weights stored transposed vs. PyTorch: w1 (2,3), w2 (3,2); b1 (3,), b2 (2,).
    tb_rows: rows (x128 lanes) per grid step; 2048 rows = 1 MiB f32 per buffer.
    """
    B, in_f = x.shape
    assert in_f == 2 and w2.shape[1] == 2

    n = 2 * B                                    # interleaved element count
    rows = pl.cdiv(n, 128)
    # Keep >=2 grid steps when there is enough work (lets v7x use both TCs),
    # but never below the 8-sublane minimum and never above the requested tile.
    tile_rows = max(8, min(tb_rows, _round_up(pl.cdiv(rows, 2), 8)))
    rows_pad = _round_up(rows, tile_rows)
    n_pad = rows_pad * 128

    # Free view: (B,2) row-major == interleaved flat stream.  Only a tail pad
    # (zeros) is added when needed; no transpose, no full-array scatter.
    xf = x.astype(jnp.float32).reshape(n)
    if n_pad != n:
        xf = jnp.pad(xf, (0, n_pad - n))
    xt = xf.reshape(rows_pad, 128)

    cost = pl.CostEstimate(
        flops=30 * n_pad,                        # ~per-lane FMA count
        transcendentals=3 * n_pad,               # 3 tanh per lane
        bytes_accessed=8 * n_pad,                # 4 B in + 4 B out per lane
    )
    smem = pl.BlockSpec(memory_space=pltpu.MemorySpace.SMEM)

    ot = pl.pallas_call(
        _mlp_kernel,
        out_shape=jax.ShapeDtypeStruct((rows_pad, 128), jnp.float32),
        grid=(rows_pad // tile_rows,),
        in_specs=[
            pl.BlockSpec((tile_rows, 128), lambda i: (i, 0)),   # interleaved x tile
            smem, smem, smem, smem,                             # w1, b1, w2, b2
        ],
        out_specs=pl.BlockSpec((tile_rows, 128), lambda i: (i, 0)),
        compiler_params=pltpu.CompilerParams(
            dimension_semantics=("parallel",)),
        cost_estimate=cost,
    )(xt, w1, b1, w2, b2)

    # Free views/slices back to (B, 2): same interleaved layout as the input.
    return ot.reshape(-1)[:n].reshape(B, 2)


def net_predict(x, w1, b1, w2, b2):
    # Net.predict: softmax is monotone, so comparing the two logits suffices.
    # TODO(synk): optionally fuse the class decision into the kernel (int8
    # output) to cut output HBM traffic further for inference-only use.
    out = net_forward(x, w1, b1, w2, b2)
    return jnp.where(out[:, 0] > out[:, 1], 0, 1).astype(jnp.int32)


def init_params(key):
    """Deterministic init mimicking nn.Linear's uniform(-1/sqrt(fan_in), ...)."""
    k1, k2, k3, k4 = jax.random.split(key, 4)
    lim1 = 1.0 / jnp.sqrt(2.0)
    lim2 = 1.0 / jnp.sqrt(3.0)
    # Stored as (in, out) so the math is x @ W (PyTorch stores (out, in)).
    w1 = jax.random.uniform(k1, (2, 3), jnp.float32, -lim1, lim1)
    b1 = jax.random.uniform(k2, (3,), jnp.float32, -lim1, lim1)
    w2 = jax.random.uniform(k3, (3, 2), jnp.float32, -lim2, lim2)
    b2 = jax.random.uniform(k4, (2,), jnp.float32, -lim2, lim2)
    return w1, b1, w2, b2


if __name__ == "__main__":
    key = jax.random.PRNGKey(0)
    kx, kx2, kp = jax.random.split(key, 3)
    w1, b1, w2, b2 = init_params(kp)

    # Small batch (single 8x128 tile, grid=(1,)).
    B = 8
    x = jax.random.normal(kx, (B, 2), jnp.float32)
    out = jax.block_until_ready(net_forward(x, w1, b1, w2, b2))
    ref = jnp.tanh(x @ w1 + b1) @ w2 + b2
    assert out.shape == (B, 2)
    assert jnp.allclose(out, ref, atol=1e-5, rtol=1e-5)

    # Ragged batch exercising a multi-step grid (tb_rows=8 -> grid=(3,)).
    B2 = 1500
    x2 = jax.random.normal(kx2, (B2, 2), jnp.float32)
    out2 = jax.block_until_ready(net_forward(x2, w1, b1, w2, b2, tb_rows=8))
    ref2 = jnp.tanh(x2 @ w1 + b1) @ w2 + b2
    assert out2.shape == (B2, 2)
    assert jnp.allclose(out2, ref2, atol=1e-5, rtol=1e-5)

    _pred = jax.block_until_ready(net_predict(x, w1, b1, w2, b2))
    assert _pred.shape == (B,)

    print("KERNEL_OK")
</pallas_src>

<mosaic_0001>
module attributes {stable_mosaic.version = 11 : i64} {
  func.func @_mlp_kernel(%arg0: i32, %arg1: memref<8x128xf32, #tpu.memory_space<vmem>>, %arg2: memref<2x3xf32, #tpu.memory_space<smem>>, %arg3: memref<3xf32, #tpu.memory_space<smem>>, %arg4: memref<3x2xf32, #tpu.memory_space<smem>>, %arg5: memref<2xf32, #tpu.memory_space<smem>>, %arg6: memref<8x128xf32, #tpu.memory_space<vmem>>) attributes {dimension_semantics = [#tpu.dimension_semantics<parallel>], iteration_bounds = array<i64: 1>, scalar_prefetch = 0 : i64, scratch_operands = 0 : i64, tpu.core_type = #tpu.core_type<tc>, window_params = [{transform_indices = @transform_0, window_bounds = array<i64: 8, 128>}, {transform_indices = @transform_1, window_bounds = array<i64: 2, 3>}, {transform_indices = @transform_2, window_bounds = array<i64: 3>}, {transform_indices = @transform_3, window_bounds = array<i64: 3, 2>}, {transform_indices = @transform_4, window_bounds = array<i64: 2>}, {transform_indices = @transform_5, window_bounds = array<i64: 8, 128>}]} {
    %c0 = arith.constant 0 : index
    %c0_0 = arith.constant 0 : index
    %0 = vector.load %arg1[%c0, %c0_0] : memref<8x128xf32, #tpu.memory_space<vmem>>, vector<8x128xf32>
    %1 = tpu.iota {dimensions = array<i32: 1>} : vector<8x128xi32>
    %c1_i32 = arith.constant 1 : i32
    %2 = vector.broadcast %c1_i32 : i32 to vector<8x128xi32>
    %3 = arith.andi %1, %2 : vector<8x128xi32>
    %c0_i32 = arith.constant 0 : i32
    %4 = vector.broadcast %c0_i32 : i32 to vector<8x128xi32>
    %5 = arith.cmpi eq, %3, %4 : vector<8x128xi32>
    %c1_i32_1 = arith.constant 1 : i32
    %6 = tpu.dynamic_rotate %0 by %c1_i32_1 dim 1 : vector<8x128xf32>, i32 -> vector<8x128xf32>
    %c127_i32 = arith.constant 127 : i32
    %7 = tpu.dynamic_rotate %0 by %c127_i32 dim 1 : vector<8x128xf32>, i32 -> vector<8x128xf32>
    %8 = arith.select %5, %0, %6 : vector<8x128xi1>, vector<8x128xf32>
    %9 = arith.select %5, %7, %0 : vector<8x128xi1>, vector<8x128xf32>
    %c0_2 = arith.constant 0 : index
    %c0_3 = arith.constant 0 : index
    %10 = memref.load %arg2[%c0_2, %c0_3] : memref<2x3xf32, #tpu.memory_space<smem>>
    %11 = vector.broadcast %10 : f32 to vector<8x128xf32>
    %12 = arith.mulf %11, %8 : vector<8x128xf32>
    %c1 = arith.constant 1 : index
    %c0_4 = arith.constant 0 : index
    %13 = memref.load %arg2[%c1, %c0_4] : memref<2x3xf32, #tpu.memory_space<smem>>
    %14 = vector.broadcast %13 : f32 to vector<8x128xf32>
    %15 = arith.mulf %14, %9 : vector<8x128xf32>
    %16 = arith.addf %12, %15 : vector<8x128xf32>
    %c0_5 = arith.constant 0 : index
    %17 = memref.load %arg3[%c0_5] : memref<3xf32, #tpu.memory_space<smem>>
    %18 = vector.broadcast %17 : f32 to vector<8x128xf32>
    %19 = arith.addf %16, %18 : vector<8x128xf32>
    %20 = math.tanh %19 : vector<8x128xf32>
    %c0_6 = arith.constant 0 : index
    %c1_7 = arith.constant 1 : index
    %21 = memref.load %arg2[%c0_6, %c1_7] : memref<2x3xf32, #tpu.memory_space<smem>>
    %22 = vector.broadcast %21 : f32 to vector<8x128xf32>
    %23 = arith.mulf %22, %8 : vector<8x128xf32>
    %c1_8 = arith.constant 1 : index
    %c1_9 = arith.constant 1 : index
    %24 = memref.load %arg2[%c1_8, %c1_9] : memref<2x3xf32, #tpu.memory_space<smem>>
    %25 = vector.broadcast %24 : f32 to vector<8x128xf32>
    %26 = arith.mulf %25, %9 : vector<8x128xf32>
    %27 = arith.addf %23, %26 : vector<8x128xf32>
    %c1_10 = arith.constant 1 : index
    %28 = memref.load %arg3[%c1_10] : memref<3xf32, #tpu.memory_space<smem>>
    %29 = vector.broadcast %28 : f32 to vector<8x128xf32>
    %30 = arith.addf %27, %29 : vector<8x128xf32>
    %31 = math.tanh %30 : vector<8x128xf32>
    %c0_11 = arith.constant 0 : index
    %c2 = arith.constant 2 : index
    %32 = memref.load %arg2[%c0_11, %c2] : memref<2x3xf32, #tpu.memory_space<smem>>
    %33 = vector.broadcast %32 : f32 to vector<8x128xf32>
    %34 = arith.mulf %33, %8 : vector<8x128xf32>
    %c1_12 = arith.constant 1 : index
    %c2_13 = arith.constant 2 : index
    %35 = memref.load %arg2[%c1_12, %c2_13] : memref<2x3xf32, #tpu.memory_space<smem>>
    %36 = vector.broadcast %35 : f32 to vector<8x128xf32>
    %37 = arith.mulf %36, %9 : vector<8x128xf32>
    %38 = arith.addf %34, %37 : vector<8x128xf32>
    %c2_14 = arith.constant 2 : index
    %39 = memref.load %arg3[%c2_14] : memref<3xf32, #tpu.memory_space<smem>>
    %40 = vector.broadcast %39 : f32 to vector<8x128xf32>
    %41 = arith.addf %38, %40 : vector<8x128xf32>
    %42 = math.tanh %41 : vector<8x128xf32>
    %c0_15 = arith.constant 0 : index
    %c0_16 = arith.constant 0 : index
    %43 = memref.load %arg4[%c0_15, %c0_16] : memref<3x2xf32, #tpu.memory_space<smem>>
    %c0_17 = arith.constant 0 : index
    %c1_18 = arith.constant 1 : index
    %44 = memref.load %arg4[%c0_17, %c1_18] : memref<3x2xf32, #tpu.memory_space<smem>>
    %45 = vector.broadcast %43 : f32 to vector<8x128xf32>
    %46 = vector.broadcast %44 : f32 to vector<8x128xf32>
    %47 = arith.select %5, %45, %46 : vector<8x128xi1>, vector<8x128xf32>
    %c1_19 = arith.constant 1 : index
    %c0_20 = arith.constant 0 : index
    %48 = memref.load %arg4[%c1_19, %c0_20] : memref<3x2xf32, #tpu.memory_space<smem>>
    %c1_21 = arith.constant 1 : index
    %c1_22 = arith.constant 1 : index
    %49 = memref.load %arg4[%c1_21, %c1_22] : memref<3x2xf32, #tpu.memory_space<smem>>
    %50 = vector.broadcast %48 : f32 to vector<8x128xf32>
    %51 = vector.broadcast %49 : f32 to vector<8x128xf32>
    %52 = arith.select %5, %50, %51 : vector<8x128xi1>, vector<8x128xf32>
    %c2_23 = arith.constant 2 : index
    %c0_24 = arith.constant 0 : index
    %53 = memref.load %arg4[%c2_23, %c0_24] : memref<3x2xf32, #tpu.memory_space<smem>>
    %c2_25 = arith.constant 2 : index
    %c1_26 = arith.constant 1 : index
    %54 = memref.load %arg4[%c2_25, %c1_26] : memref<3x2xf32, #tpu.memory_space<smem>>
    %55 = vector.broadcast %53 : f32 to vector<8x128xf32>
    %56 = vector.broadcast %54 : f32 to vector<8x128xf32>
    %57 = arith.select %5, %55, %56 : vector<8x128xi1>, vector<8x128xf32>
    %c0_27 = arith.constant 0 : index
    %58 = memref.load %arg5[%c0_27] : memref<2xf32, #tpu.memory_space<smem>>
    %c1_28 = arith.constant 1 : index
    %59 = memref.load %arg5[%c1_28] : memref<2xf32, #tpu.memory_space<smem>>
    %60 = vector.broadcast %58 : f32 to vector<8x128xf32>
    %61 = vector.broadcast %59 : f32 to vector<8x128xf32>
    %62 = arith.select %5, %60, %61 : vector<8x128xi1>, vector<8x128xf32>
    %63 = arith.mulf %47, %20 : vector<8x128xf32>
    %64 = arith.mulf %52, %31 : vector<8x128xf32>
    %65 = arith.addf %63, %64 : vector<8x128xf32>
    %66 = arith.mulf %57, %42 : vector<8x128xf32>
    %67 = arith.addf %65, %66 : vector<8x128xf32>
    %68 = arith.addf %67, %62 : vector<8x128xf32>
    %c0_29 = arith.constant 0 : index
    %c0_30 = arith.constant 0 : index
    %69 = vector.load %arg6[%c0_29, %c0_30] : memref<8x128xf32, #tpu.memory_space<vmem>>, vector<8x128xf32>
    tpu.vector_store %arg6[%c0_29, %c0_30], %68 {strides = array<i32>} : memref<8x128xf32, #tpu.memory_space<vmem>>, vector<8x128xf32>,
    return
  }
  func.func @transform_0(%arg0: i32) -> (i32, i32) {
    %c0_i32 = arith.constant 0 : i32
    %c0_i32_0 = arith.constant 0 : i32
    return %arg0, %c0_i32 : i32, i32
  }
  func.func @transform_1(%arg0: i32) -> (i32, i32) {
    %c0_i32 = arith.constant 0 : i32
    %c0_i32_0 = arith.constant 0 : i32
    %c0_i32_1 = arith.constant 0 : i32
    return %c0_i32, %c0_i32_0 : i32, i32
  }
  func.func @transform_2(%arg0: i32) -> i32 {
    %c0_i32 = arith.constant 0 : i32
    %c0_i32_0 = arith.constant 0 : i32
    return %c0_i32 : i32
  }
  func.func @transform_3(%arg0: i32) -> (i32, i32) {
    %c0_i32 = arith.constant 0 : i32
    %c0_i32_0 = arith.constant 0 : i32
    %c0_i32_1 = arith.constant 0 : i32
    return %c0_i32, %c0_i32_0 : i32, i32
  }
  func.func @transform_4(%arg0: i32) -> i32 {
    %c0_i32 = arith.constant 0 : i32
    %c0_i32_0 = arith.constant 0 : i32
    return %c0_i32 : i32
  }
  func.func @transform_5(%arg0: i32) -> (i32, i32) {
    %c0_i32 = arith.constant 0 : i32
    %c0_i32_0 = arith.constant 0 : i32
    return %arg0, %c0_i32 : i32, i32
  }
}

</mosaic_0001>

<llo_original>
// kernel: tpu_custom_call.1
$region0: #{tpu_custom_call.1}
  #allocation0 [shape = 'u32[]', space=smem, size = 0x4, offset = 0x4, fixed_abs, tag = 'smem constant byte address 0x4 - core index']
  #allocation1 [shape = 'u32[144,128]{1,0:T(1,128)}', space=vmem, size = 0x12000, scoped, tag = 'internal scratch']
  %s0 = inlined_call_operand.hbm [shape: f32[8,128], index: 0, kind: input, shape index: {}]
  %s1 = inlined_call_operand.vmem [shape: f32[2,3], index: 1, kind: input, shape index: {}]
  %s2 = inlined_call_operand.vmem [shape: f32[3], index: 2, kind: input, shape index: {}]
  %s3 = inlined_call_operand.vmem [shape: f32[3,2], index: 3, kind: input, shape index: {}]
  %s4 = inlined_call_operand.vmem [shape: f32[2], index: 4, kind: input, shape index: {}]
  %s5 = inlined_call_operand.hbm [shape: f32[8,128], index: 5, kind: output, shape index: {}]
  %s6 = sld [smem:[#allocation0]]
  $region50: #{tpu_custom_call.1} parent=0
    _
  %s8 = ssub.s32 1, %s6
  %s9 = scalar_select 0, %s8, %s6
  $region1: #{tpu_custom_call.1} parent=0
    #allocation2 [shape = 'u8[4096]{0}', space=vmem, size = 0x1000, scoped, tag = 'input window, operand 0, single buffered']
    #allocation3 [shape = 's32[1]{0}', space=sflag, size = 0x4, scoped, tag = 'scoped memory for tpu_custom_call.1']
    #allocation4 [shape = 's32[1]{0}', space=sflag, size = 0x4, scoped, tag = 'scoped memory for tpu_custom_call.1']
    #allocation5 [shape = 's32[1]{0}', space=sflag, size = 0x4, scoped, tag = 'scoped memory for tpu_custom_call.1']
    #allocation6 [shape = 'u8[1024]{0}', space=smem, size = 0x400, scoped, tag = 'input window, operand 1, single buffered']
    #allocation7 [shape = 'u8[512]{0}', space=smem, size = 0x200, scoped, tag = 'input window, operand 2, single buffered']
    #allocation8 [shape = 's32[1]{0}', space=sflag, size = 0x4, scoped, tag = 'scoped memory for tpu_custom_call.1']
    #allocation9 [shape = 'u8[2048]{0}', space=smem, size = 0x800, scoped, tag = 'input window, operand 3, single buffered']
    #allocation10 [shape = 'u8[512]{0}', space=smem, size = 0x200, scoped, tag = 'input window, operand 4, single buffered']
    #allocation11 [shape = 's32[1]{0}', space=sflag, size = 0x4, scoped, tag = 'scoped memory for tpu_custom_call.1']
    #allocation12 [shape = 'u8[4096]{0}', space=vmem, size = 0x1000, scoped, tag = 'output window, operand 0, single buffered']
    %10 = vsyncpa [#allocation3], 0
    %11 = vsyncpa [#allocation5], 0
    %12 = vsyncpa [#allocation8], 0
    %13 = vsyncpa [#allocation11], 0
    %14 = vsyncpa [#allocation4], 0
    // Predicated region
    $region2: #{tpu_custom_call.1} parent=1 // pred_check
      _
    $region3: #{tpu_custom_call.1} parent=1 // pred_check_branch
      %16 = sbr.rel (0) target = $region5
    $region4: #{tpu_custom_call.1} parent=1 // pred_region
      %s18 = ssub.s32 128, 128
      %19 = vsyncadd [#allocation3], %s18
      %s21 = sshll.u32 [#allocation2], 4
      %s22 = int_to_ptr.vmem [resolvable:$true] %s21
      %24 = dma.hbm_to_vmem [thread:$0]  %s0, 128, %s22, [#allocation3]
    $region5: #{tpu_custom_call.1} parent=1 // pred_fallthru
      _
    // Predicated region
    $region6: #{tpu_custom_call.1} parent=1 // pred_check
      _
    $region7: #{tpu_custom_call.1} parent=1 // pred_check_branch
      %26 = sbr.rel (0) target = $region9
    $region8: #{tpu_custom_call.1} parent=1 // pred_region
      %s28 = ssub.s32 32, 32
      %29 = vsyncadd [#allocation5], %s28
      %s31 = sshll.u32 %s1, 4
      %s32 = int_to_ptr.vmem [resolvable:$true] %s31
      %34 = dma.vmem_to_smem %s32, 32, [#allocation6], [#allocation5]
    $region9: #{tpu_custom_call.1} parent=1 // pred_fallthru
      _
    // Predicated region
    $region10: #{tpu_custom_call.1} parent=1 // pred_check
      _
    $region11: #{tpu_custom_call.1} parent=1 // pred_check_branch
      %36 = sbr.rel (0) target = $region13
    $region12: #{tpu_custom_call.1} parent=1 // pred_region
      %s38 = ssub.s32 16, 16
      %39 = vsyncadd [#allocation8], %s38
      %s41 = sshll.u32 %s2, 4
      %s42 = int_to_ptr.vmem [resolvable:$true] %s41
      %44 = dma.vmem_to_smem %s42, 16, [#allocation7], [#allocation8]
    $region13: #{tpu_custom_call.1} parent=1 // pred_fallthru
      _
    // Predicated region
    $region14: #{tpu_custom_call.1} parent=1 // pred_check
      _
    $region15: #{tpu_custom_call.1} parent=1 // pred_check_branch
      %46 = sbr.rel (0) target = $region17
    $region16: #{tpu_custom_call.1} parent=1 // pred_region
      %s48 = ssub.s32 64, 64
      %49 = vsyncadd [#allocation8], %s48
      %s51 = sshll.u32 %s3, 4
      %s52 = int_to_ptr.vmem [resolvable:$true] %s51
      %54 = dma.vmem_to_smem %s52, 64, [#allocation9], [#allocation8]
    $region17: #{tpu_custom_call.1} parent=1 // pred_fallthru
      _
    // Predicated region
    $region18: #{tpu_custom_call.1} parent=1 // pred_check
      _
    $region19: #{tpu_custom_call.1} parent=1 // pred_check_branch
      %56 = sbr.rel (0) target = $region21
    $region20: #{tpu_custom_call.1} parent=1 // pred_region
      %s58 = ssub.s32 16, 16
      %59 = vsyncadd [#allocation11], %s58
      %s61 = sshll.u32 %s4, 4
      %s62 = int_to_ptr.vmem [resolvable:$true] %s61
      %64 = dma.vmem_to_smem %s62, 16, [#allocation10], [#allocation11]
    $region21: #{tpu_custom_call.1} parent=1 // pred_fallthru
      _
    // Predicated region
    $region22: #{tpu_custom_call.1} parent=1 // pred_check
      _
    $region23: #{tpu_custom_call.1} parent=1 // pred_check_branch
      %66 = sbr.rel (0) target = $region25
    $region24: #{tpu_custom_call.1} parent=1 // pred_region
      %67 = dma.done [#allocation3], 128
    $region25: #{tpu_custom_call.1} parent=1 // pred_fallthru
      _
    // Predicated region
    $region26: #{tpu_custom_call.1} parent=1 // pred_check
      _
    $region27: #{tpu_custom_call.1} parent=1 // pred_check_branch
      %69 = sbr.rel (0) target = $region29
    $region28: #{tpu_custom_call.1} parent=1 // pred_region
      %70 = dma.done [#allocation5], 32
    $region29: #{tpu_custom_call.1} parent=1 // pred_fallthru
      _
    // Predicated region
    $region30: #{tpu_custom_call.1} parent=1 // pred_check
      _
    $region31: #{tpu_custom_call.1} parent=1 // pred_check_branch
      %72 = sbr.rel (0) target = $region33
    $region32: #{tpu_custom_call.1} parent=1 // pred_region
      %73 = dma.done [#allocation8], 16
    $region33: #{tpu_custom_call.1} parent=1 // pred_fallthru
      _
    // Predicated region
    $region34: #{tpu_custom_call.1} parent=1 // pred_check
      _
    $region35: #{tpu_custom_call.1} parent=1 // pred_check_branch
      %75 = sbr.rel (0) target = $region37
    $region36: #{tpu_custom_call.1} parent=1 // pred_region
      %76 = dma.done [#allocation8], 64
    $region37: #{tpu_custom_call.1} parent=1 // pred_fallthru
      _
    // Predicated region
    $region38: #{tpu_custom_call.1} parent=1 // pred_check
      _
    $region39: #{tpu_custom_call.1} parent=1 // pred_check_branch
      %78 = sbr.rel (0) target = $region41
    $region40: #{tpu_custom_call.1} parent=1 // pred_region
      %79 = dma.done [#allocation11], 16
    $region41: #{tpu_custom_call.1} parent=1 // pred_fallthru
      _
    %80 = sfence
    %v81 = vld [vmem:[#allocation2] sm:$0xff]
    %v82 = vlaneseq
    %v83 = vand.u32 %v82, 127
    %v84 = vand.u32 %v83, 1
    %vm85 = vcmp.eq.s32.totalorder %v84, 0
    %86 = vrot.lane.b32.xlu0 %v81, 1
    %v87 = vpop.permute.xlu0 %86
    %88 = vrot.lane.b32.xlu0 %v81, 127
    %v89 = vpop.permute.xlu0 %88
    %v90 = vsel %vm85, %v81, %v87
    %v91 = vsel %vm85, %v89, %v81
    %s92 = sld [smem:[#allocation6]]
    %v93 = vstv %s92
    %v94 = vmul.f32 %v93, %v90
    %s95 = sld [smem:[#allocation6 + $0x80]]
    %v96 = vstv %s95
    %v97 = vmul.f32 %v96, %v91
    %v98 = vadd.f32 %v94, %v97
    %s99 = sld [smem:[#allocation7]]
    %v100 = vstv %s99
    %v101 = vadd.f32 %v98, %v100
    %v102 = vtanh.pop %v101
    %s103 = sld [smem:[#allocation6 + $0x1]]
    %v104 = vstv %s103
    %v105 = vmul.f32 %v104, %v90
    %s106 = sld [smem:[#allocation6 + $0x81]]
    %v107 = vstv %s106
    %v108 = vmul.f32 %v107, %v91
    %v109 = vadd.f32 %v105, %v108
    %s110 = sld [smem:[#allocation7 + $0x1]]
    %v111 = vstv %s110
    %v112 = vadd.f32 %v109, %v111
    %v113 = vtanh.pop %v112
    %s114 = sld [smem:[#allocation6 + $0x2]]
    %v115 = vstv %s114
    %v116 = vmul.f32 %v115, %v90
    %s117 = sld [smem:[#allocation6 + $0x82]]
    %v118 = vstv %s117
    %v119 = vmul.f32 %v118, %v91
    %v120 = vadd.f32 %v116, %v119
    %s121 = sld [smem:[#allocation7 + $0x2]]
    %v122 = vstv %s121
    %v123 = vadd.f32 %v120, %v122
    %v124 = vtanh.pop %v123
    %s125 = sld [smem:[#allocation9]]
    %s126 = sld [smem:[#allocation9 + $0x1]]
    %v127 = vstv %s125
    %v128 = vstv %s126
    %v129 = vsel %vm85, %v127, %v128
    %s130 = sld [smem:[#allocation9 + $0x80]]
    %s131 = sld [smem:[#allocation9 + $0x81]]
    %v132 = vstv %s130
    %v133 = vstv %s131
    %v134 = vsel %vm85, %v132, %v133
    %s135 = sld [smem:[#allocation9 + $0x100]]
    %s136 = sld [smem:[#allocation9 + $0x101]]
    %v137 = vstv %s135
    %v138 = vstv %s136
    %v139 = vsel %vm85, %v137, %v138
    %s140 = sld [smem:[#allocation10]]
    %s141 = sld [smem:[#allocation10 + $0x1]]
    %v142 = vstv %s140
    %v143 = vstv %s141
    %v144 = vsel %vm85, %v142, %v143
    %v145 = vmul.f32 %v129, %v102
    %v146 = vmul.f32 %v134, %v113
    %v147 = vadd.f32 %v145, %v146
    %v148 = vmul.f32 %v139, %v124
    %v149 = vadd.f32 %v147, %v148
    %v150 = vadd.f32 %v149, %v144
    %151 = vst [vmem:[#allocation12] sm:$0xff] %v150
    // Predicated region
    $region42: #{tpu_custom_call.1} parent=1 // pred_check
      _
    $region43: #{tpu_custom_call.1} parent=1 // pred_check_branch
      %153 = sbr.rel (0) target = $region45
    $region44: #{tpu_custom_call.1} parent=1 // pred_region
      %s155 = ssub.s32 128, 128
      %156 = vsyncadd [#allocation4], %s155
      %s158 = sshll.u32 [#allocation12], 4
      %s159 = int_to_ptr.vmem [resolvable:$true] %s158
      %161 = dma.vmem_to_hbm [thread:$0]  %s159, 128, %s5, [#allocation4]
    $region45: #{tpu_custom_call.1} parent=1 // pred_fallthru
      _
    // Predicated region
    $region46: #{tpu_custom_call.1} parent=1 // pred_check
      _
    $region47: #{tpu_custom_call.1} parent=1 // pred_check_branch
      %163 = sbr.rel (0) target = $region49
    $region48: #{tpu_custom_call.1} parent=1 // pred_region
      %164 = dma.done [#allocation4], 128
    $region49: #{tpu_custom_call.1} parent=1 // pred_fallthru
      _
    %165 = vsyncpa [#allocation3], 1
    %166 = vsyncpa [#allocation4], 1
    %167 = vsyncpa [#allocation5], 1
    %168 = vsyncpa [#allocation8], 1
    %169 = vsyncpa [#allocation11], 1

</llo_original>
